<compile_context>
chip_gen: v7x
topology: tpu7x:2x2x1
jax: 0.10.0
libtpu: 0.0.40
codegen_flags: <defaults>
</compile_context>

<pallas_src>
from functools import partial

import jax
import jax.numpy as jnp
from jax import lax
from jax.experimental import pallas as pl
from jax.experimental.pallas import tpu as pltpu


def _round_up(x: int, m: int) -> int:
    return ((x + m - 1) // m) * m


def _integer_power(x, power):
    """x**power via repeated multiplies for small non-negative integer powers."""
    if float(power) == float(int(power)) and int(power) >= 0:
        p = int(power)
        if p == 0:
            return jnp.ones_like(x)
        y = x
        for _ in range(p - 1):
            y = y * x
        return y
    return jnp.power(x, power)


def _sumsq_kernel(x_ref, out_ref, *, t):
    # x_ref: (tk, 2T) block of the flattened control (row = [v_0..v_{T-1}, w_0..w_{T-1}]).
    # out_ref: (tk, 1) per-rollout sum of squares of the angular channel.
    x = x_ref[...].astype(jnp.float32)
    lane = lax.broadcasted_iota(jnp.int32, x.shape, 1)
    w = jnp.where(lane >= t, x, 0.0)          # keep only the angular channel lanes
    out_ref[...] = jnp.sum(w * w, axis=1, keepdims=True)


@partial(jax.jit, static_argnames=("weight", "power"))
def angular_velocity_critic(control, *, weight: float = 1.0, power: int = 1):
    """Pallas implementation of AngularVelocityCritic.__call__.

    Args:
      control: (K, 2, T) array of [linear, angular] velocities per rollout.
               (trajectory / goal_pose are unused by this critic.)
    Returns:
      (K, 1) float32 cost = (weight * sumsq_w / max(sumsq_w)) ** power.
    """
    K, C, T = control.shape
    assert C == 2, "control layout must be (K, 2, T)"

    # Free, contiguous reshape: the kernel reads both channels in one dense row
    # and masks out the linear-velocity lanes on the VPU.
    x = control.reshape(K, 2 * T)
    itemsize = jnp.dtype(control.dtype).itemsize

    # Row tile: multiple of 8 sublanes, sized so one input block is ~<= 16 MiB
    # (double buffered => ~32 MiB, below the 48 MiB vmem limit requested below).
    block_budget_bytes = 16 * 1024 * 1024
    row_bytes = 2 * T * itemsize
    tk_from_bytes = max(8, (block_budget_bytes // row_bytes // 8) * 8)
    tk = min(_round_up(K, 8), tk_from_bytes)
    if K > 8:
        # Keep >= 2 blocks so both v7x TensorCores get work (harmless on v5e/v6e).
        tk = min(tk, _round_up(pl.cdiv(K, 2), 8))
    tk = max(tk, 8)
    grid = (pl.cdiv(K, tk),)  # ragged trailing block allowed; overhang rows discarded

    cost_estimate = pl.CostEstimate(
        flops=4 * K * T,                      # square + accumulate over the angular lanes
        transcendentals=0,
        bytes_accessed=K * 2 * T * itemsize + K * 4,
    )

    sums = pl.pallas_call(
        partial(_sumsq_kernel, t=T),
        out_shape=jax.ShapeDtypeStruct((K, 1), jnp.float32),
        grid=grid,
        in_specs=[pl.BlockSpec((tk, 2 * T), lambda i: (i, 0))],
        out_specs=pl.BlockSpec((tk, 1), lambda i: (i, 0)),
        compiler_params=pltpu.CompilerParams(
            dimension_semantics=("parallel",),
            vmem_limit_bytes=48 * 1024 * 1024,
        ),
        cost_estimate=cost_estimate,
    )(x)

    # Normalize + weight / power over K floats: plain jnp, fused by XLA.
    s = sums[:, 0]
    cost = s / jnp.max(s)                     # matches torch (0/0 -> NaN if all zeros)
    out = _integer_power(weight * cost, power).reshape(-1, 1)
    return out.astype(jnp.float32)


def _reference(control, weight=1.0, power=1):
    w = control[:, 1, :].astype(jnp.float32)
    cost = jnp.sum(w * w, axis=1)
    cost = cost / jnp.max(cost)
    return jnp.power(weight * cost.reshape(-1, 1), float(power))


if __name__ == "__main__":
    key = jax.random.PRNGKey(0)

    # Small demo matching the module layout: 8 rollouts, [v, w] controls, 16 steps.
    K, C, T = 8, 2, 16
    control = jax.random.normal(key, (K, C, T), dtype=jnp.float32)
    out = jax.block_until_ready(angular_velocity_critic(control, weight=1.0, power=1))
    ref = _reference(control, weight=1.0, power=1)
    assert out.shape == (K, 1)
    assert jnp.allclose(out, ref, atol=1e-5, rtol=1e-5), (out, ref)

    # Ragged multi-block path (K not a multiple of 8, >= 2 grid blocks),
    # non-trivial weight / power.
    key2 = jax.random.PRNGKey(0)
    K2, T2 = 1030, 32
    control2 = jax.random.normal(key2, (K2, 2, T2), dtype=jnp.float32)
    out2 = jax.block_until_ready(angular_velocity_critic(control2, weight=2.5, power=2))
    ref2 = _reference(control2, weight=2.5, power=2)
    assert out2.shape == (K2, 1)
    assert jnp.allclose(out2, ref2, atol=1e-4, rtol=1e-4)

    # Narrow-dtype input: DMA'd as bf16, upcast to f32 inside the kernel.
    control3 = jax.random.normal(jax.random.PRNGKey(0), (64, 2, 24), dtype=jnp.bfloat16)
    out3 = jax.block_until_ready(angular_velocity_critic(control3, weight=1.0, power=1))
    ref3 = _reference(control3, weight=1.0, power=1)
    assert out3.shape == (64, 1)
    assert jnp.allclose(out3, ref3, atol=1e-3, rtol=1e-3)

    print("KERNEL_OK")
</pallas_src>

<mosaic_0001>
module attributes {stable_mosaic.version = 11 : i64} {
  func.func @_sumsq_kernel(%arg0: i32, %arg1: memref<8x32xf32, #tpu.memory_space<vmem>>, %arg2: memref<8x1xf32, #tpu.memory_space<vmem>>) attributes {dimension_semantics = [#tpu.dimension_semantics<parallel>], iteration_bounds = array<i64: 1>, scalar_prefetch = 0 : i64, scratch_operands = 0 : i64, tpu.core_type = #tpu.core_type<tc>, window_params = [{transform_indices = @transform_0, window_bounds = array<i64: 8, 32>}, {transform_indices = @transform_1, window_bounds = array<i64: 8, 1>}]} {
    %c0 = arith.constant 0 : index
    %c0_0 = arith.constant 0 : index
    %0 = vector.load %arg1[%c0, %c0_0] : memref<8x32xf32, #tpu.memory_space<vmem>>, vector<8x32xf32>
    %1 = tpu.iota {dimensions = array<i32: 1>} : vector<8x32xi32>
    %c16_i32 = arith.constant 16 : i32
    %2 = vector.broadcast %c16_i32 : i32 to vector<8x32xi32>
    %3 = arith.cmpi sge, %1, %2 : vector<8x32xi32>
    %cst = arith.constant 0.000000e+00 : f32
    %4 = vector.broadcast %cst : f32 to vector<8x32xf32>
    %5 = arith.select %3, %0, %4 : vector<8x32xi1>, vector<8x32xf32>
    %6 = arith.mulf %5, %5 : vector<8x32xf32>
    %cst_1 = arith.constant dense<0.000000e+00> : vector<8xf32>
    %7 = vector.multi_reduction <add>, %6, %cst_1 [1] : vector<8x32xf32> to vector<8xf32>
    %8 = vector.shape_cast %7 : vector<8xf32> to vector<8x1xf32>
    %c0_2 = arith.constant 0 : index
    %c0_3 = arith.constant 0 : index
    %9 = vector.load %arg2[%c0_2, %c0_3] : memref<8x1xf32, #tpu.memory_space<vmem>>, vector<8x1xf32>
    tpu.vector_store %arg2[%c0_2, %c0_3], %8 {strides = array<i32>} : memref<8x1xf32, #tpu.memory_space<vmem>>, vector<8x1xf32>,
    return
  }
  func.func @transform_0(%arg0: i32) -> (i32, i32) {
    %c0_i32 = arith.constant 0 : i32
    %c0_i32_0 = arith.constant 0 : i32
    return %arg0, %c0_i32 : i32, i32
  }
  func.func @transform_1(%arg0: i32) -> (i32, i32) {
    %c0_i32 = arith.constant 0 : i32
    %c0_i32_0 = arith.constant 0 : i32
    return %arg0, %c0_i32 : i32, i32
  }
}

</mosaic_0001>

<llo_original>
// kernel: angular_velocity_critic.1
$region0: #{angular_velocity_critic.1}
  #allocation0 [shape = 'u32[]', space=smem, size = 0x4, offset = 0x4, fixed_abs, tag = 'smem constant byte address 0x4 - core index']
  #allocation1 [shape = 'u32[144,128]{1,0:T(1,128)}', space=vmem, size = 0x12000, scoped, tag = 'internal scratch']
  %s0 = inlined_call_operand.vmem [shape: f32[8,32], index: 0, kind: input, shape index: {}]
  %s1 = inlined_call_operand.vmem [shape: f32[8,1], index: 1, kind: output, shape index: {}]
  %s2 = sld [smem:[#allocation0]]
  $region14: #{angular_velocity_critic.1} parent=0
    _
  %s4 = ssub.s32 1, %s2
  %s5 = scalar_select 0, %s4, %s2
  // Predicated region
  $region2: #{angular_velocity_critic.1} parent=0 // pred_check
    _
  $region3: #{angular_velocity_critic.1} parent=0 // pred_check_branch
    %7 = sbr.rel (0) target = $region5
  $region4: #{angular_velocity_critic.1} parent=0 // pred_region
    _
  $region5: #{angular_velocity_critic.1} parent=0 // pred_fallthru
    _
  %v8 = vld [vmem:[%s0] sm:$0xff]
  %v9 = vlaneseq
  %v10 = vand.u32 %v9, 127
  %vm11 = vcmp.ge.s32.totalorder %v10, 16
  %v12 = vsel %vm11, %v8, 0.0
  %v13 = vmul.f32 %v12, %v12
  %vm14 = vcmask 261120
  %v15 = vsel %vm14, %v13, 0.0
  %16 = vadd.xlane.f32.xlu0 %v15
  %v17 = vpop.xlane.xlu0 %16
  %vm18 = vcmask 7168
  %19 = vst.msk [vmem:[%s1] sm:$0xff] %vm18, %v17
  // Predicated region
  $region6: #{angular_velocity_critic.1} parent=0 // pred_check
    _
  $region7: #{angular_velocity_critic.1} parent=0 // pred_check_branch
    %21 = sbr.rel (0) target = $region9
  $region8: #{angular_velocity_critic.1} parent=0 // pred_region
    _
  $region9: #{angular_velocity_critic.1} parent=0 // pred_fallthru
    _
  // Predicated region
  $region10: #{angular_velocity_critic.1} parent=0 // pred_check
    _
  $region11: #{angular_velocity_critic.1} parent=0 // pred_check_branch
    %23 = sbr.rel (0) target = $region13
  $region12: #{angular_velocity_critic.1} parent=0 // pred_region
    _
  $region13: #{angular_velocity_critic.1} parent=0 // pred_fallthru
    _

</llo_original>
